<compile_context>
chip_gen: v6e
topology: v6e:2x2x1
jax: 0.10.0
libtpu: 0.0.40
codegen_flags: <defaults>
</compile_context>

<pallas_src>
import functools

import jax
import jax.numpy as jnp
from jax.experimental import pallas as pl
from jax.experimental.pallas import tpu as pltpu

_LANE = 128
_SUBLANE = 8
_MAX_TILE_ROWS = 4096
_TILE_BYTES_BUDGET = 2 * 1024 * 1024  # per pipelined input buffer


def _round_up(x, m):
    return (x + m - 1) // m * m


def _choose_tile_rows(rows, cols):
    """Rows per block: multiple of 8, capped so 2 inputs x 2 buffers fit VMEM."""
    by_vmem = max(_SUBLANE,
                  (_TILE_BYTES_BUDGET // (cols * 4)) // _SUBLANE * _SUBLANE)
    tile = min(by_vmem, _MAX_TILE_ROWS, _round_up(rows, _SUBLANE))
    return max(_SUBLANE, (tile // _SUBLANE) * _SUBLANE)


# ---------------------------------------------------------------------------
# Kernel bodies: each processes one (TILE_ROWS, cols) block and accumulates a
# masked partial sum into a resident (1, 8, 128) output block (one per split).
# ---------------------------------------------------------------------------

def _bce_elem(x, y):
    # nn.BCEWithLogitsLoss(reduction='mean'), numerically-stable form:
    #   l = max(x,0) - x*y + log1p(exp(-|x|))
    return jnp.maximum(x, 0.0) - x * y + jnp.log1p(jnp.exp(-jnp.abs(x)))


def _mse_elem(x, y):
    # nn.MSELoss(reduction='mean')
    d = x - y
    return d * d


def _elemwise_tile_kernel(pred_ref, tgt_ref, acc_ref, *, elem_fn, steps,
                          n_valid, needs_mask):
    split = pl.program_id(0)
    step = pl.program_id(1)

    @pl.when(step == 0)
    def _():
        acc_ref[...] = jnp.zeros_like(acc_ref)

    x = pred_ref[...].astype(jnp.float32)
    y = tgt_ref[...].astype(jnp.float32)
    l = elem_fn(x, y)

    if needs_mask:  # static: only emitted when padding can reach this tile
        tr, tc = l.shape
        row = jax.lax.broadcasted_iota(jnp.int32, (tr, tc), 0)
        col = jax.lax.broadcasted_iota(jnp.int32, (tr, tc), 1)
        flat = ((split * steps + step) * tr + row) * tc + col
        l = jnp.where(flat < n_valid, l, 0.0)

    acc_ref[...] = acc_ref[...] + jnp.sum(l)


def _ce_tile_kernel(pred_ref, tgt_ref, acc_ref, *, steps, n_valid, needs_mask):
    # calc_celoss: t = argmax(target, dim=1); nn.CrossEntropyLoss()(pred, t)
    #   loss_i = logsumexp_j(pred[i, :]) - pred[i, t_i]
    split = pl.program_id(0)
    step = pl.program_id(1)

    @pl.when(step == 0)
    def _():
        acc_ref[...] = jnp.zeros_like(acc_ref)

    x = pred_ref[...].astype(jnp.float32)   # (TILE_B, C)
    t = tgt_ref[...].astype(jnp.float32)
    tb, nc = x.shape

    col = jax.lax.broadcasted_iota(jnp.int32, (tb, nc), 1)
    # argmax over classes (first maximal index), built from max + iota.
    t_max = jnp.max(t, axis=1, keepdims=True)
    arg = jnp.min(jnp.where(t >= t_max, col, nc), axis=1, keepdims=True)
    # gather pred[i, arg_i] via a one-hot select
    sel = jnp.sum(jnp.where(col == arg, x, 0.0), axis=1, keepdims=True)
    # stable logsumexp over classes
    x_max = jnp.max(x, axis=1, keepdims=True)
    lse = x_max + jnp.log(jnp.sum(jnp.exp(x - x_max), axis=1, keepdims=True))
    per_row = lse - sel                                          # (TILE_B, 1)

    if needs_mask:  # static: only emitted when batch padding exists
        row = jax.lax.broadcasted_iota(jnp.int32, (tb, 1), 0)
        g_row = (split * steps + step) * tb + row
        per_row = jnp.where(g_row < n_valid, per_row, 0.0)

    acc_ref[...] = acc_ref[...] + jnp.sum(per_row)


# ---------------------------------------------------------------------------
# Tiled reduction runner
# ---------------------------------------------------------------------------

def _tiled_loss_sum(kernel_body, a, b, *, valid_units, units_per_row, denom):
    """Streams two (rows, cols) arrays through VMEM tiles, returns sum / denom."""
    rows, cols = a.shape
    tile = _choose_tile_rows(rows, cols)
    steps_total = pl.cdiv(rows, tile)
    splits = 2 if steps_total >= 2 else 1      # per-core partial sums (v7x)
    steps_total = _round_up(steps_total, splits)
    padded_rows = steps_total * tile
    if padded_rows != rows:
        a = jnp.pad(a, ((0, padded_rows - rows), (0, 0)))
        b = jnp.pad(b, ((0, padded_rows - rows), (0, 0)))
    steps = steps_total // splits
    needs_mask = (padded_rows * units_per_row) != valid_units

    kernel = functools.partial(kernel_body, steps=steps, n_valid=valid_units,
                               needs_mask=needs_mask)
    in_map = lambda p, s: (p * steps + s, 0)

    partials = pl.pallas_call(
        kernel,
        out_shape=jax.ShapeDtypeStruct((splits, _SUBLANE, _LANE), jnp.float32),
        grid_spec=pltpu.PrefetchScalarGridSpec(
            num_scalar_prefetch=0,
            grid=(splits, steps),
            in_specs=[pl.BlockSpec((tile, cols), in_map),
                      pl.BlockSpec((tile, cols), in_map)],
            out_specs=pl.BlockSpec((1, _SUBLANE, _LANE), lambda p, s: (p, 0, 0)),
        ),
        compiler_params=pltpu.CompilerParams(
            dimension_semantics=("parallel", "arbitrary")),
    )(a, b)
    # Each split replicates its partial sum over its (8, 128) block; pick one
    # element per split and combine in f32.
    return jnp.sum(partials[:, 0, 0]) / denom


# ---------------------------------------------------------------------------
# Wrapper (mirrors the PyTorch LPLoss module)
# ---------------------------------------------------------------------------

class LPLoss:
    """LPLoss forward pass; loss_name in {'bce', 'ce', 'mse'}."""

    def __init__(self, loss_name):
        if loss_name not in ("bce", "ce", "mse"):
            raise ValueError(
                "the loss func should be at least one of [bce, ce, mse]")
        self.loss_name = loss_name

    def __call__(self, pred, target):
        assert pred.shape == target.shape and pred.ndim == 2
        b, c = pred.shape
        # TODO(synk): at tiny shapes this is pure launch/DMA overhead; fuse the
        # loss into the kernel producing `pred` (or batch many evaluations).
        if self.loss_name == "ce":
            return _tiled_loss_sum(_ce_tile_kernel, pred, target,
                                   valid_units=b, units_per_row=1,
                                   denom=float(b))

        # bce / mse are purely elementwise -> flatten to a lane-dense
        # (rows, 128) layout so every vreg is fully lane-occupied.
        n = b * c
        rows = _round_up(n, _LANE) // _LANE
        pad = rows * _LANE - n
        pred_f = pred.reshape(-1)
        tgt_f = target.reshape(-1)
        if pad:
            pred_f = jnp.pad(pred_f, (0, pad))
            tgt_f = jnp.pad(tgt_f, (0, pad))
        pred2 = pred_f.reshape(rows, _LANE)
        tgt2 = tgt_f.reshape(rows, _LANE)
        elem_fn = _bce_elem if self.loss_name == "bce" else _mse_elem
        body = functools.partial(_elemwise_tile_kernel, elem_fn=elem_fn)
        return _tiled_loss_sum(body, pred2, tgt2,
                               valid_units=n, units_per_row=_LANE,
                               denom=float(n))


# ---------------------------------------------------------------------------
# Pure-JAX references (for sanity checking)
# ---------------------------------------------------------------------------

def _ref_bce(pred, target):
    x = pred.astype(jnp.float32)
    y = target.astype(jnp.float32)
    l = jnp.maximum(x, 0.0) - x * y + jnp.log1p(jnp.exp(-jnp.abs(x)))
    return jnp.mean(l)


def _ref_mse(pred, target):
    d = pred.astype(jnp.float32) - target.astype(jnp.float32)
    return jnp.mean(d * d)


def _ref_ce(pred, target):
    t = jnp.argmax(target.astype(jnp.float32), axis=1)
    x = pred.astype(jnp.float32)
    lse = jax.scipy.special.logsumexp(x, axis=1)
    sel = jnp.take_along_axis(x, t[:, None], axis=1)[:, 0]
    return jnp.mean(lse - sel)


# ---------------------------------------------------------------------------

if __name__ == "__main__":
    key = jax.random.PRNGKey(0)
    k1, k2, k3 = jax.random.split(key, 3)

    cases = []
    # (8, 32): the "shipped" toy shape; (10, 37): exercises batch/lane padding
    # and the in-kernel masking path.
    for (B, C) in [(8, 32), (10, 37)]:
        pred = jax.random.normal(k1, (B, C), dtype=jnp.float32)
        target_prob = jax.random.uniform(k2, (B, C), dtype=jnp.float32)
        target_ce = jax.random.normal(k3, (B, C), dtype=jnp.float32)
        cases += [
            ("bce", pred, target_prob, _ref_bce),
            ("ce", pred, target_ce, _ref_ce),
            ("mse", pred, target_prob, _ref_mse),
        ]

    # bf16 inputs (halved HBM traffic); kernels cast/accumulate in f32.
    pred_bf = jax.random.normal(k1, (8, 32), dtype=jnp.float32).astype(jnp.bfloat16)
    tgt_bf = jax.random.uniform(k2, (8, 32), dtype=jnp.float32).astype(jnp.bfloat16)
    cases.append(("mse", pred_bf, tgt_bf, _ref_mse))

    for name, p, t, ref_fn in cases:
        out = jax.block_until_ready(LPLoss(name)(p, t))
        ref = jax.block_until_ready(ref_fn(p, t))
        assert jnp.allclose(out, ref, rtol=1e-5, atol=1e-5), (name, out, ref)

    print("KERNEL_OK")
</pallas_src>

<mosaic_0001>
module attributes {stable_mosaic.version = 11 : i64} {
  func.func @_elemwise_tile_kernel(%arg0: i32, %arg1: i32, %arg2: memref<8x128xf32, #tpu.memory_space<vmem>>, %arg3: memref<8x128xf32, #tpu.memory_space<vmem>>, %arg4: memref<1x8x128xf32, #tpu.memory_space<vmem>>) attributes {dimension_semantics = [#tpu.dimension_semantics<parallel>, #tpu.dimension_semantics<arbitrary>], iteration_bounds = array<i64: 1, 1>, scalar_prefetch = 0 : i64, scratch_operands = 0 : i64, tpu.core_type = #tpu.core_type<tc>, window_params = [{transform_indices = @transform_0, window_bounds = array<i64: 8, 128>}, {transform_indices = @transform_1, window_bounds = array<i64: 8, 128>}, {transform_indices = @transform_2, window_bounds = array<i64: 1, 8, 128>}]} {
    %c0_i32 = arith.constant 0 : i32
    %0 = arith.cmpi eq, %arg1, %c0_i32 : i32
    %1 = arith.extui %0 : i1 to i32
    %c0_i32_0 = arith.constant 0 : i32
    %2 = arith.cmpi ne, %1, %c0_i32_0 : i32
    scf.if %2 {
      %cst_13 = arith.constant 0.000000e+00 : f32
      %37 = vector.broadcast %cst_13 : f32 to vector<1x8x128xf32>
      %c0_14 = arith.constant 0 : index
      %c0_15 = arith.constant 0 : index
      %c0_16 = arith.constant 0 : index
      %38 = vector.load %arg4[%c0_14, %c0_15, %c0_16] : memref<1x8x128xf32, #tpu.memory_space<vmem>>, vector<1x8x128xf32>
      tpu.vector_store %arg4[%c0_14, %c0_15, %c0_16], %37 {strides = array<i32>} : memref<1x8x128xf32, #tpu.memory_space<vmem>>, vector<1x8x128xf32>,
    } else {
    }
    %c0 = arith.constant 0 : index
    %c0_1 = arith.constant 0 : index
    %3 = vector.load %arg2[%c0, %c0_1] : memref<8x128xf32, #tpu.memory_space<vmem>>, vector<8x128xf32>
    %c0_2 = arith.constant 0 : index
    %c0_3 = arith.constant 0 : index
    %4 = vector.load %arg3[%c0_2, %c0_3] : memref<8x128xf32, #tpu.memory_space<vmem>>, vector<8x128xf32>
    %cst = arith.constant 0.000000e+00 : f32
    %5 = vector.broadcast %cst : f32 to vector<8x128xf32>
    %6 = arith.maximumf %3, %5 : vector<8x128xf32>
    %7 = arith.mulf %3, %4 : vector<8x128xf32>
    %8 = arith.subf %6, %7 : vector<8x128xf32>
    %9 = math.absf %3 : vector<8x128xf32>
    %cst_4 = arith.constant 0.000000e+00 : f32
    %10 = vector.broadcast %cst_4 : f32 to vector<8x128xf32>
    %11 = arith.subf %10, %9 : vector<8x128xf32>
    %12 = math.exp %11 : vector<8x128xf32>
    %13 = math.log1p %12 : vector<8x128xf32>
    %14 = arith.addf %8, %13 : vector<8x128xf32>
    %15 = tpu.iota {dimensions = array<i32: 0>} : vector<8x128xi32>
    %16 = tpu.iota {dimensions = array<i32: 1>} : vector<8x128xi32>
    %c1_i32 = arith.constant 1 : i32
    %17 = arith.muli %arg0, %c1_i32 : i32
    %18 = arith.addi %17, %arg1 : i32
    %c8_i32 = arith.constant 8 : i32
    %19 = arith.muli %18, %c8_i32 : i32
    %20 = vector.broadcast %19 : i32 to vector<8x128xi32>
    %21 = arith.addi %20, %15 : vector<8x128xi32>
    %c128_i32 = arith.constant 128 : i32
    %22 = vector.broadcast %c128_i32 : i32 to vector<8x128xi32>
    %23 = arith.muli %21, %22 : vector<8x128xi32>
    %24 = arith.addi %23, %16 : vector<8x128xi32>
    %c256_i32 = arith.constant 256 : i32
    %25 = vector.broadcast %c256_i32 : i32 to vector<8x128xi32>
    %26 = arith.cmpi slt, %24, %25 : vector<8x128xi32>
    %cst_5 = arith.constant 0.000000e+00 : f32
    %27 = vector.broadcast %cst_5 : f32 to vector<8x128xf32>
    %28 = arith.select %26, %14, %27 : vector<8x128xi1>, vector<8x128xf32>
    %c0_6 = arith.constant 0 : index
    %c0_7 = arith.constant 0 : index
    %c0_8 = arith.constant 0 : index
    %29 = vector.load %arg4[%c0_6, %c0_7, %c0_8] : memref<1x8x128xf32, #tpu.memory_space<vmem>>, vector<1x8x128xf32>
    %30 = vector.shape_cast %28 : vector<8x128xf32> to vector<1x8x128xf32>
    %cst_9 = arith.constant dense<0.000000e+00> : vector<1xf32>
    %31 = vector.multi_reduction <add>, %30, %cst_9 [1, 2] : vector<1x8x128xf32> to vector<1xf32>
    %32 = vector.shape_cast %31 : vector<1xf32> to vector<1x1x1xf32>
    %33 = vector.extract %32[0, 0, 0] : f32 from vector<1x1x1xf32>
    %34 = vector.broadcast %33 : f32 to vector<1x8x128xf32>
    %35 = arith.addf %29, %34 : vector<1x8x128xf32>
    %c0_10 = arith.constant 0 : index
    %c0_11 = arith.constant 0 : index
    %c0_12 = arith.constant 0 : index
    %36 = vector.load %arg4[%c0_10, %c0_11, %c0_12] : memref<1x8x128xf32, #tpu.memory_space<vmem>>, vector<1x8x128xf32>
    tpu.vector_store %arg4[%c0_10, %c0_11, %c0_12], %35 {strides = array<i32>} : memref<1x8x128xf32, #tpu.memory_space<vmem>>, vector<1x8x128xf32>,
    return
  }
  func.func @transform_0(%arg0: i32, %arg1: i32) -> (i32, i32) {
    %c1_i32 = arith.constant 1 : i32
    %0 = arith.muli %arg0, %c1_i32 : i32
    %1 = arith.addi %0, %arg1 : i32
    %c0_i32 = arith.constant 0 : i32
    %c0_i32_0 = arith.constant 0 : i32
    return %1, %c0_i32 : i32, i32
  }
  func.func @transform_1(%arg0: i32, %arg1: i32) -> (i32, i32) {
    %c1_i32 = arith.constant 1 : i32
    %0 = arith.muli %arg0, %c1_i32 : i32
    %1 = arith.addi %0, %arg1 : i32
    %c0_i32 = arith.constant 0 : i32
    %c0_i32_0 = arith.constant 0 : i32
    return %1, %c0_i32 : i32, i32
  }
  func.func @transform_2(%arg0: i32, %arg1: i32) -> (i32, i32, i32) {
    %c0_i32 = arith.constant 0 : i32
    %c0_i32_0 = arith.constant 0 : i32
    %c0_i32_1 = arith.constant 0 : i32
    return %arg0, %c0_i32, %c0_i32_0 : i32, i32, i32
  }
}

</mosaic_0001>

<llo_original>
// kernel: tpu_custom_call.1
$region0: #{tpu_custom_call.1}
  #allocation0 [shape = 'u32[]', space=smem, size = 0x4, offset = 0x4, fixed_abs, tag = 'smem constant byte address 0x4 - core index']
  #allocation1 [shape = 'u32[144,128]{1,0:T(1,128)}', space=vmem, size = 0x12000, scoped, tag = 'internal scratch']
  %s0 = inlined_call_operand.hbm [shape: f32[8,128], index: 0, kind: input, shape index: {}]
  %s1 = inlined_call_operand.hbm [shape: f32[8,128], index: 1, kind: input, shape index: {}]
  %s2 = inlined_call_operand.hbm [shape: f32[1,8,128], index: 2, kind: output, shape index: {}]
  %s3 = sld [smem:[#allocation0]]
  $region30: #{tpu_custom_call.1} parent=0
    _
  %s5 = ssub.s32 1, %s3
  %s6 = scalar_select 0, %s5, %s3
  $region1: #{tpu_custom_call.1} parent=0
    #allocation2 [shape = 'u8[4096]{0}', space=vmem, size = 0x1000, scoped, tag = 'input window, operand 0, single buffered']
    #allocation3 [shape = 's32[1]{0}', space=sflag, size = 0x4, scoped, tag = 'scoped memory for tpu_custom_call.1']
    #allocation4 [shape = 's32[1]{0}', space=sflag, size = 0x4, scoped, tag = 'scoped memory for tpu_custom_call.1']
    #allocation5 [shape = 'u8[4096]{0}', space=vmem, size = 0x1000, scoped, tag = 'input window, operand 1, single buffered']
    #allocation6 [shape = 's32[1]{0}', space=sflag, size = 0x4, scoped, tag = 'scoped memory for tpu_custom_call.1']
    #allocation7 [shape = 'u8[4096]{0}', space=vmem, size = 0x1000, scoped, tag = 'output window, operand 0, single buffered']
    %7 = vsyncpa [#allocation3], 0
    %8 = vsyncpa [#allocation6], 0
    %9 = vsyncpa [#allocation4], 0
    // Predicated region
    $region2: #{tpu_custom_call.1} parent=1 // pred_check
      _
    $region3: #{tpu_custom_call.1} parent=1 // pred_check_branch
      %11 = sbr.rel (0) target = $region5
    $region4: #{tpu_custom_call.1} parent=1 // pred_region
      %s12 = sadd.s32 0, 0
      %s14 = ssub.s32 128, 128
      %15 = vsyncadd [#allocation3], %s14
      %s16 = smul.addr %s12, 128
      %s17 = scalar_lea.hbm %s0, %s16
      %s19 = sshll.u32 [#allocation2], 4
      %s20 = int_to_ptr.vmem [resolvable:$true] %s19
      %22 = dma.hbm_to_vmem [thread:$0]  %s17, 128, %s20, [#allocation3]
    $region5: #{tpu_custom_call.1} parent=1 // pred_fallthru
      _
    // Predicated region
    $region6: #{tpu_custom_call.1} parent=1 // pred_check
      _
    $region7: #{tpu_custom_call.1} parent=1 // pred_check_branch
      %24 = sbr.rel (0) target = $region9
    $region8: #{tpu_custom_call.1} parent=1 // pred_region
      %s25 = sadd.s32 0, 0
      %s27 = ssub.s32 128, 128
      %28 = vsyncadd [#allocation6], %s27
      %s29 = smul.addr %s25, 128
      %s30 = scalar_lea.hbm %s1, %s29
      %s32 = sshll.u32 [#allocation5], 4
      %s33 = int_to_ptr.vmem [resolvable:$true] %s32
      %35 = dma.hbm_to_vmem [thread:$0]  %s30, 128, %s33, [#allocation6]
    $region9: #{tpu_custom_call.1} parent=1 // pred_fallthru
      _
    // Predicated region
    $region10: #{tpu_custom_call.1} parent=1 // pred_check
      _
    $region11: #{tpu_custom_call.1} parent=1 // pred_check_branch
      %37 = sbr.rel (0) target = $region13
    $region12: #{tpu_custom_call.1} parent=1 // pred_region
      %38 = dma.done [#allocation3], 128
    $region13: #{tpu_custom_call.1} parent=1 // pred_fallthru
      _
    // Predicated region
    $region14: #{tpu_custom_call.1} parent=1 // pred_check
      _
    $region15: #{tpu_custom_call.1} parent=1 // pred_check_branch
      %40 = sbr.rel (0) target = $region17
    $region16: #{tpu_custom_call.1} parent=1 // pred_region
      %41 = dma.done [#allocation6], 128
    $region17: #{tpu_custom_call.1} parent=1 // pred_fallthru
      _
    %s42 = sadd.s32 0, 0
    %s43 = sadd.s32 0, 0
    %p44 = scmp.eq.s32.totalorder 0, 0
    // Predicated region
    $region18: #{tpu_custom_call.1} parent=1 // pred_check
      %p45 = pneg %p44
    $region19: #{tpu_custom_call.1} parent=1 // pred_check_branch
      %47 = sbr.rel (%p45) target = $region21
    $region20: #{tpu_custom_call.1} parent=1 // pred_region
      %48 = vst [vmem:[#allocation7] sm:$0xff] 0.0
    $region21: #{tpu_custom_call.1} parent=1 // pred_fallthru
      _
    %v49 = vld [vmem:[#allocation2] sm:$0xff]
    %v50 = vld [vmem:[#allocation5] sm:$0xff]
    %v51 = vmax.f32 %v49, 0.0
    %v52 = vmul.f32 %v49, %v50
    %v53 = vsub.f32 %v51, %v52
    %v54 = vand.u32 2147483647, %v49
    %v55 = vsub.f32 0.0, %v54
    %v56 = vmul.f32 %v55, 1.442695
    %v57 = vpow.pop %v56
    %v58 = vadd.f32 %v57, 1.0
    %v59 = vlog2.pop %v58
    %v60 = vmul.f32 %v59, 0.6931472
    %v61 = vmul.f32 -0.5, %v57
    %v62 = vadd.f32 %v61, 1.0
    %v63 = vmul.f32 %v62, %v57
    %v64 = vand.u32 2147483647, %v57
    %vm65 = vcmp.lt.f32.partialorder %v64, 0.0004427343
    %v66 = vsel %vm65, %v63, %v60
    %v67 = vadd.f32 %v53, %v66
    %v68 = vlaneseq
    %v69 = vshrl.u32 %v68, 7
    %v70 = vlaneseq
    %v71 = vand.u32 %v70, 127
    %s72 = sadd.s32 0, 0
    %s73 = smul.u32 %s72, 8
    %v74 = vstv %s73
    %v75 = vadd.s32 %v74, %v69
    %v76 = vmul.u32 %v75, 128
    %v77 = vadd.s32 %v76, %v71
    %vm78 = vcmp.lt.s32.totalorder %v77, 256
    %v79 = vsel %vm78, %v67, 0.0
    %v80 = vld [vmem:[#allocation7] sm:$0xff]
    %81 = vadd.xlane.f32.xlu0 %v79
    %v82 = vpop.xlane.xlu0 %81
    %v83 = vrot.slane %v82, 4
    %v84 = vadd.f32 %v82, %v83
    %v85 = vrot.slane %v84, 2
    %v86 = vadd.f32 %v84, %v85
    %v87 = vrot.slane %v86, 1
    %v88 = vadd.f32 %v86, %v87
    %s89 = vtos %v88
    %v90 = vstv %s89
    %v91 = vadd.f32 %v80, %v90
    %92 = vst [vmem:[#allocation7] sm:$0xff] %v91
    // Predicated region
    $region22: #{tpu_custom_call.1} parent=1 // pred_check
      _
    $region23: #{tpu_custom_call.1} parent=1 // pred_check_branch
      %94 = sbr.rel (0) target = $region25
    $region24: #{tpu_custom_call.1} parent=1 // pred_region
      %s96 = ssub.s32 128, 128
      %97 = vsyncadd [#allocation4], %s96
      %s99 = sshll.u32 [#allocation7], 4
      %s100 = int_to_ptr.vmem [resolvable:$true] %s99
      %102 = dma.vmem_to_hbm [thread:$0]  %s100, 128, %s2, [#allocation4]
    $region25: #{tpu_custom_call.1} parent=1 // pred_fallthru
      _
    // Predicated region
    $region26: #{tpu_custom_call.1} parent=1 // pred_check
      _
    $region27: #{tpu_custom_call.1} parent=1 // pred_check_branch
      %104 = sbr.rel (0) target = $region29
    $region28: #{tpu_custom_call.1} parent=1 // pred_region
      %105 = dma.done [#allocation4], 128
    $region29: #{tpu_custom_call.1} parent=1 // pred_fallthru
      _
    %106 = vsyncpa [#allocation3], 1
    %107 = vsyncpa [#allocation6], 1
    %108 = vsyncpa [#allocation4], 1

</llo_original>
